<compile_context>
chip_gen: v7x
topology: tpu7x:2x2x1
jax: 0.10.0
libtpu: 0.0.40
codegen_flags: <defaults>
</compile_context>

<pallas_src>
import functools

import jax
import jax.numpy as jnp
from jax.experimental import pallas as pl
from jax.experimental.pallas import tpu as pltpu


def _round_up(x, m):
    return ((x + m - 1) // m) * m


def _round_down(x, m):
    return (x // m) * m


def _tdnn_kernel(x0_ref, xh_ref, w_ref, p_ref, o_ref, xw_ref, *,
                 K, dilation, stride, tt, tsub, neg_slope):
    """One (batch, time-tile) grid step.

    x0_ref : (1, tin_blk, D_in)   main input time block (x dtype)
    xh_ref : (1, halo_pad, D_in)  receptive-field halo rows from the next block
    w_ref  : (K, D_in, D_out)     conv weight, tap-major, lane-dense (MXU dtype)
    p_ref  : (3, D_out)           f32 per-channel params: bias / BN scale / BN shift
    o_ref  : (1, tt, D_out)       output tile
    xw_ref : (tin_blk + halo_pad, D_in)  VMEM scratch window (MXU dtype)
    """
    tin = x0_ref.shape[1]
    halo = xh_ref.shape[1]
    d_out = w_ref.shape[2]

    # Stitch main block + halo rows into one contiguous window.  This is the
    # single f32->bf16 downcast of the input tile; every conv tap below is a
    # static slice of the window.  Halo copy is only `halo` (<=16-ish) rows.
    xw_ref[0:tin, :] = x0_ref[0].astype(xw_ref.dtype)
    xw_ref[tin:tin + halo, :] = xh_ref[0].astype(xw_ref.dtype)

    bias = p_ref[0:1, :]      # (1, D_out) f32
    scale = p_ref[1:2, :]
    shift = p_ref[2:3, :]

    # Process the time tile in sub-chunks so the live f32 accumulator stays
    # well inside the 64x4KiB vreg file even for large tiles (no spill storm).
    for s in range(tt // tsub):
        row0 = s * tsub
        # Conv1d as K shifted matmuls on the MXU (bf16 in, f32 accumulate).
        # im2col tap-folding intentionally not used: with bf16 inputs this
        # kernel is output-write bound, so extra VMEM stores would cost more
        # than the MXU passes they save.
        acc = jnp.zeros((tsub, d_out), jnp.float32)
        for k in range(K):
            start = row0 * stride + k * dilation
            if stride == 1:
                xs = xw_ref[start:start + tsub, :]
            else:
                # TODO(synk): for stride>1, a per-phase pre-compaction at stitch
                # time would avoid K strided loads per sub-chunk (v5e vld slots).
                xs = xw_ref[pl.ds(start, tsub, stride=stride), :]
            acc = acc + jnp.dot(xs, w_ref[k], preferred_element_type=jnp.float32)

        y = acc + bias
        # LeakyReLU (PyTorch default negative_slope = 0.01).
        y = jnp.where(y >= 0, y, neg_slope * y)
        # Dropout: p = 0.0 / inference -> identity.
        # TODO(synk): training-mode dropout (p > 0) would need pltpu.prng_* masking.
        # BatchNorm1d folded to a per-channel affine (inference / running stats).
        y = y * scale + shift
        # Lane-dense store (full D_out width) of this sub-chunk.
        o_ref[0, row0:row0 + tsub, :] = y.astype(o_ref.dtype)


def tdnn_forward(x, weight, bias, gamma, beta, running_mean, running_var, *,
                 stride=1, dilation=1, padding=0, eps=1e-5,
                 negative_slope=0.01, time_tile=512, mxu_dtype=jnp.bfloat16):
    """Pallas TDNN forward.  x: (B, T, D_in) -> (B, T_out, D_out)."""
    B, T, d_in = x.shape
    d_out, d_in_w, K = weight.shape
    assert d_in == d_in_w, (d_in, d_in_w)

    t_padded = T + 2 * padding
    t_out = (t_padded - dilation * (K - 1) - 1) // stride + 1
    assert t_out > 0

    # ---- receptive-field halo: extra padded-input rows past the main block ----
    halo = max(0, (K - 1) * dilation - (stride - 1))
    halo_pad = max(8, _round_up(halo, 8))

    # ---- accumulator sub-chunk: keep tsub*D_out*4 bytes within ~96 KiB of vregs ----
    acc_budget = 96 * 1024
    tsub = max(8, min(256, _round_down(acc_budget // (d_out * 4), 8)))
    tsub = min(tsub, _round_up(t_out, 8))
    tsub = _round_up(tsub, halo_pad)   # one quantum: tt % tsub == 0 => tt % halo_pad == 0

    # ---- VMEM-derived output-time tile (biggest that fits the budget) ----
    try:
        phys_vmem = pltpu.get_tpu_info().vmem_capacity_bytes
    except Exception:
        phys_vmem = 64 * 1024 * 1024          # v7x per-core floor (conservative)
    vmem_budget = int(phys_vmem * 0.70)        # headroom for compiler temporaries

    xbytes = jnp.dtype(x.dtype).itemsize
    mbytes = jnp.dtype(mxu_dtype).itemsize
    d_in_l = _round_up(d_in, 128)              # lane-padded footprint
    d_out_l = _round_up(d_out, 128)
    const_bytes = (2 * halo_pad * d_in_l * xbytes                     # halo in (2 bufs)
                   + 2 * K * _round_up(d_in, 8) * d_out_l * mbytes    # weight (2 bufs)
                   + 2 * 8 * d_out_l * 4                              # packed params
                   + halo_pad * d_in_l * mbytes)                      # halo rows of scratch
    per_row = (2 * stride * d_in_l * xbytes                           # x0 block (2 bufs)
               + 2 * d_out_l * xbytes                                 # output (2 bufs)
               + stride * d_in_l * mbytes)                            # stitch scratch
    tt_cap = max(tsub, _round_down((vmem_budget - const_bytes) // per_row, tsub))

    tt = min(_round_up(t_out, tsub), _round_up(time_tile, tsub), tt_cap)
    tt = max(tt, tsub)
    num_t = pl.cdiv(t_out, tt)
    # v7x shards the parallel grid axes over its 2 TensorCores: keep >= 2 units.
    if B * num_t < 2 and t_out > tsub:
        tt = _round_up(-(-t_out // 2), tsub)
        num_t = pl.cdiv(t_out, tt)

    tin_blk = tt * stride
    assert tin_blk % halo_pad == 0
    ratio = tin_blk // halo_pad                # halo block index multiplier

    # ---- pad time: conv zero padding + full coverage of the last halo block ----
    t_need = num_t * tin_blk + halo_pad
    right_pad = max(0, t_need - padding - T)
    if padding or right_pad:
        x_pad = jnp.pad(x, ((0, 0), (padding, right_pad), (0, 0)))
    else:
        x_pad = x
    # NOTE: rows of the last (partial) output tile beyond t_out are computed from
    # these zero rows and masked by Pallas on writeback — finite and discarded.

    # ---- weights / fused per-channel parameters ----
    # Conv weight tap-major, lane-dense in D_out, MXU dtype: (K, D_in, D_out).
    wt = jnp.transpose(weight, (2, 1, 0)).astype(mxu_dtype)
    # Fold BatchNorm (inference semantics, running stats) into scale/shift.
    # TODO(synk): training-mode BatchNorm (batch statistics over (B, T_out)) would
    # need an extra cross-grid reduction pass; not implemented here.
    inv_std = 1.0 / jnp.sqrt(running_var.astype(jnp.float32) + eps)
    g32 = gamma.astype(jnp.float32)
    bn_scale = g32 * inv_std
    bn_shift = beta.astype(jnp.float32) - running_mean.astype(jnp.float32) * bn_scale
    params = jnp.stack([bias.astype(jnp.float32), bn_scale, bn_shift])   # (3, D_out)

    kernel = functools.partial(_tdnn_kernel, K=K, dilation=dilation,
                               stride=stride, tt=tt, tsub=tsub,
                               neg_slope=negative_slope)

    return pl.pallas_call(
        kernel,
        out_shape=jax.ShapeDtypeStruct((B, t_out, d_out), x.dtype),
        grid=(B, num_t),
        in_specs=[
            pl.BlockSpec((1, tin_blk, d_in), lambda b, t: (b, t, 0)),
            pl.BlockSpec((1, halo_pad, d_in), lambda b, t: (b, (t + 1) * ratio, 0)),
            pl.BlockSpec((K, d_in, d_out), lambda b, t: (0, 0, 0)),
            pl.BlockSpec((3, d_out), lambda b, t: (0, 0)),
        ],
        out_specs=pl.BlockSpec((1, tt, d_out), lambda b, t: (b, t, 0)),
        scratch_shapes=[pltpu.VMEM((tin_blk + halo_pad, d_in), mxu_dtype)],
        compiler_params=pltpu.CompilerParams(
            dimension_semantics=("parallel", "parallel"),
            vmem_limit_bytes=min(int(phys_vmem * 0.85), 112 * 1024 * 1024)),
    )(x_pad, x_pad, wt, params)


def _tdnn_ref(x, weight, bias, gamma, beta, running_mean, running_var, *,
              stride=1, dilation=1, padding=0, eps=1e-5, negative_slope=0.01):
    """Pure-JAX reference mirroring the PyTorch forward (eval-mode BN)."""
    d_out, d_in, K = weight.shape
    B, T, _ = x.shape
    xp = jnp.pad(x, ((0, 0), (padding, padding), (0, 0)))
    t_out = (T + 2 * padding - dilation * (K - 1) - 1) // stride + 1
    y = jnp.zeros((B, t_out, d_out), jnp.float32)
    for k in range(K):
        s = k * dilation
        xs = xp[:, s:s + (t_out - 1) * stride + 1:stride, :]
        y = y + jnp.einsum('btd,od->bto', xs.astype(jnp.float32),
                           weight[:, :, k].astype(jnp.float32))
    y = y + bias[None, None, :]
    y = jnp.where(y >= 0, y, negative_slope * y)
    scale = gamma / jnp.sqrt(running_var + eps)
    shift = beta - running_mean * scale
    y = y * scale[None, None, :] + shift[None, None, :]
    return y.astype(x.dtype)


if __name__ == "__main__":
    def run_case(key, B, T, d_in, d_out, K, stride, dilation, padding):
        ks = jax.random.split(key, 7)
        x = jax.random.normal(ks[0], (B, T, d_in), dtype=jnp.float32)
        weight = 0.1 * jax.random.normal(ks[1], (d_out, d_in, K), dtype=jnp.float32)
        bias = 0.1 * jax.random.normal(ks[2], (d_out,), dtype=jnp.float32)
        gamma = jax.random.uniform(ks[3], (d_out,), minval=0.5, maxval=1.5)
        beta = 0.1 * jax.random.normal(ks[4], (d_out,), dtype=jnp.float32)
        running_mean = 0.1 * jax.random.normal(ks[5], (d_out,), dtype=jnp.float32)
        running_var = jax.random.uniform(ks[6], (d_out,), minval=0.5, maxval=1.5)

        out = tdnn_forward(x, weight, bias, gamma, beta, running_mean,
                           running_var, stride=stride, dilation=dilation,
                           padding=padding)
        out = jax.block_until_ready(out)

        ref = _tdnn_ref(x, weight, bias, gamma, beta, running_mean, running_var,
                        stride=stride, dilation=dilation, padding=padding)
        t_out = (T + 2 * padding - dilation * (K - 1) - 1) // stride + 1
        assert out.shape == (B, t_out, d_out), out.shape
        max_err = float(jnp.max(jnp.abs(out.astype(jnp.float32)
                                        - ref.astype(jnp.float32))))
        # bf16 MXU inputs with f32 accumulation: slightly relaxed tolerance.
        assert jnp.allclose(out, ref, atol=3e-2, rtol=3e-2), f"max err {max_err}"

    root = jax.random.PRNGKey(0)
    k1, k2 = jax.random.split(root)
    # Default TDNN-ish config (d_in=23, context 5, padding 2).
    run_case(k1, B=2, T=64, d_in=23, d_out=128, K=5, stride=1, dilation=1, padding=2)
    # Dilated config exercising a partial (masked) last output tile.
    run_case(k2, B=2, T=50, d_in=40, d_out=64, K=5, stride=1, dilation=2, padding=0)

    print("KERNEL_OK")
</pallas_src>

<mosaic_0001>
module attributes {stable_mosaic.version = 11 : i64} {
  func.func @_tdnn_kernel(%arg0: i32, %arg1: i32, %arg2: memref<1x64x23xf32, #tpu.memory_space<vmem>>, %arg3: memref<1x8x23xf32, #tpu.memory_space<vmem>>, %arg4: memref<5x23x128xbf16, #tpu.memory_space<vmem>>, %arg5: memref<3x128xf32, #tpu.memory_space<vmem>>, %arg6: memref<1x64x128xf32, #tpu.memory_space<vmem>>, %arg7: memref<72x23xbf16, #tpu.memory_space<vmem>>) attributes {dimension_semantics = [#tpu.dimension_semantics<parallel>, #tpu.dimension_semantics<parallel>], iteration_bounds = array<i64: 2, 1>, scalar_prefetch = 0 : i64, scratch_operands = 1 : i64, tpu.core_type = #tpu.core_type<tc>, window_params = [{transform_indices = @transform_0, window_bounds = array<i64: 1, 64, 23>}, {transform_indices = @transform_1, window_bounds = array<i64: 1, 8, 23>}, {pipeline_mode = #tpu.pipeline_mode<synchronous>, transform_indices = @transform_2, window_bounds = array<i64: 5, 23, 128>}, {pipeline_mode = #tpu.pipeline_mode<synchronous>, transform_indices = @transform_3, window_bounds = array<i64: 3, 128>}, {transform_indices = @transform_4, window_bounds = array<i64: 1, 64, 128>}]} {
    %c0 = arith.constant 0 : index
    %c0_0 = arith.constant 0 : index
    %c0_1 = arith.constant 0 : index
    %0 = vector.load %arg2[%c0, %c0_0, %c0_1] : memref<1x64x23xf32, #tpu.memory_space<vmem>>, vector<1x64x23xf32>
    %1 = vector.shape_cast %0 : vector<1x64x23xf32> to vector<64x23xf32>
    %2 = arith.truncf %1 : vector<64x23xf32> to vector<64x23xbf16>
    %c0_2 = arith.constant 0 : index
    %c0_3 = arith.constant 0 : index
    %3 = vector.load %arg7[%c0_2, %c0_3] : memref<72x23xbf16, #tpu.memory_space<vmem>>, vector<64x23xbf16>
    tpu.vector_store %arg7[%c0_2, %c0_3], %2 {strides = array<i32>} : memref<72x23xbf16, #tpu.memory_space<vmem>>, vector<64x23xbf16>,
    %c0_4 = arith.constant 0 : index
    %c0_5 = arith.constant 0 : index
    %c0_6 = arith.constant 0 : index
    %4 = vector.load %arg3[%c0_4, %c0_5, %c0_6] : memref<1x8x23xf32, #tpu.memory_space<vmem>>, vector<1x8x23xf32>
    %5 = vector.shape_cast %4 : vector<1x8x23xf32> to vector<8x23xf32>
    %6 = arith.truncf %5 : vector<8x23xf32> to vector<8x23xbf16>
    %c64 = arith.constant 64 : index
    %c0_7 = arith.constant 0 : index
    %7 = vector.load %arg7[%c64, %c0_7] : memref<72x23xbf16, #tpu.memory_space<vmem>>, vector<8x23xbf16>
    tpu.vector_store %arg7[%c64, %c0_7], %6 {strides = array<i32>} : memref<72x23xbf16, #tpu.memory_space<vmem>>, vector<8x23xbf16>,
    %c0_8 = arith.constant 0 : index
    %c0_9 = arith.constant 0 : index
    %8 = vector.load %arg5[%c0_8, %c0_9] : memref<3x128xf32, #tpu.memory_space<vmem>>, vector<1x128xf32>
    %c1 = arith.constant 1 : index
    %c0_10 = arith.constant 0 : index
    %9 = vector.load %arg5[%c1, %c0_10] : memref<3x128xf32, #tpu.memory_space<vmem>>, vector<1x128xf32>
    %c2 = arith.constant 2 : index
    %c0_11 = arith.constant 0 : index
    %10 = vector.load %arg5[%c2, %c0_11] : memref<3x128xf32, #tpu.memory_space<vmem>>, vector<1x128xf32>
    %cst = arith.constant 0.000000e+00 : f32
    %11 = vector.broadcast %cst : f32 to vector<64x128xf32>
    %c0_12 = arith.constant 0 : index
    %c0_13 = arith.constant 0 : index
    %12 = vector.load %arg7[%c0_12, %c0_13] : memref<72x23xbf16, #tpu.memory_space<vmem>>, vector<64x23xbf16>
    %c0_14 = arith.constant 0 : index
    %c0_15 = arith.constant 0 : index
    %c0_16 = arith.constant 0 : index
    %13 = vector.load %arg4[%c0_14, %c0_15, %c0_16] : memref<5x23x128xbf16, #tpu.memory_space<vmem>>, vector<1x23x128xbf16>
    %14 = vector.shape_cast %13 : vector<1x23x128xbf16> to vector<23x128xbf16>
    %cst_17 = arith.constant dense<0.000000e+00> : vector<64x128xf32>
    %15 = tpu.matmul %12, %14, %cst_17 {dimension_numbers = #tpu.dot_dimension_numbers<[1], [0], [0], [1], [0, 0, 1, 1], [], []>} : vector<64x23xbf16>, vector<23x128xbf16>, vector<64x128xf32> -> vector<64x128xf32>
    %16 = arith.addf %11, %15 : vector<64x128xf32>
    %c1_18 = arith.constant 1 : index
    %c0_19 = arith.constant 0 : index
    %17 = vector.load %arg7[%c1_18, %c0_19] : memref<72x23xbf16, #tpu.memory_space<vmem>>, vector<64x23xbf16>
    %c1_20 = arith.constant 1 : index
    %c0_21 = arith.constant 0 : index
    %c0_22 = arith.constant 0 : index
    %18 = vector.load %arg4[%c1_20, %c0_21, %c0_22] : memref<5x23x128xbf16, #tpu.memory_space<vmem>>, vector<1x23x128xbf16>
    %19 = vector.shape_cast %18 : vector<1x23x128xbf16> to vector<23x128xbf16>
    %cst_23 = arith.constant dense<0.000000e+00> : vector<64x128xf32>
    %20 = tpu.matmul %17, %19, %cst_23 {dimension_numbers = #tpu.dot_dimension_numbers<[1], [0], [0], [1], [0, 0, 1, 1], [], []>} : vector<64x23xbf16>, vector<23x128xbf16>, vector<64x128xf32> -> vector<64x128xf32>
    %21 = arith.addf %16, %20 : vector<64x128xf32>
    %c2_24 = arith.constant 2 : index
    %c0_25 = arith.constant 0 : index
    %22 = vector.load %arg7[%c2_24, %c0_25] : memref<72x23xbf16, #tpu.memory_space<vmem>>, vector<64x23xbf16>
    %c2_26 = arith.constant 2 : index
    %c0_27 = arith.constant 0 : index
    %c0_28 = arith.constant 0 : index
    %23 = vector.load %arg4[%c2_26, %c0_27, %c0_28] : memref<5x23x128xbf16, #tpu.memory_space<vmem>>, vector<1x23x128xbf16>
    %24 = vector.shape_cast %23 : vector<1x23x128xbf16> to vector<23x128xbf16>
    %cst_29 = arith.constant dense<0.000000e+00> : vector<64x128xf32>
    %25 = tpu.matmul %22, %24, %cst_29 {dimension_numbers = #tpu.dot_dimension_numbers<[1], [0], [0], [1], [0, 0, 1, 1], [], []>} : vector<64x23xbf16>, vector<23x128xbf16>, vector<64x128xf32> -> vector<64x128xf32>
    %26 = arith.addf %21, %25 : vector<64x128xf32>
    %c3 = arith.constant 3 : index
    %c0_30 = arith.constant 0 : index
    %27 = vector.load %arg7[%c3, %c0_30] : memref<72x23xbf16, #tpu.memory_space<vmem>>, vector<64x23xbf16>
    %c3_31 = arith.constant 3 : index
    %c0_32 = arith.constant 0 : index
    %c0_33 = arith.constant 0 : index
    %28 = vector.load %arg4[%c3_31, %c0_32, %c0_33] : memref<5x23x128xbf16, #tpu.memory_space<vmem>>, vector<1x23x128xbf16>
    %29 = vector.shape_cast %28 : vector<1x23x128xbf16> to vector<23x128xbf16>
    %cst_34 = arith.constant dense<0.000000e+00> : vector<64x128xf32>
    %30 = tpu.matmul %27, %29, %cst_34 {dimension_numbers = #tpu.dot_dimension_numbers<[1], [0], [0], [1], [0, 0, 1, 1], [], []>} : vector<64x23xbf16>, vector<23x128xbf16>, vector<64x128xf32> -> vector<64x128xf32>
    %31 = arith.addf %26, %30 : vector<64x128xf32>
    %c4 = arith.constant 4 : index
    %c0_35 = arith.constant 0 : index
    %32 = vector.load %arg7[%c4, %c0_35] : memref<72x23xbf16, #tpu.memory_space<vmem>>, vector<64x23xbf16>
    %c4_36 = arith.constant 4 : index
    %c0_37 = arith.constant 0 : index
    %c0_38 = arith.constant 0 : index
    %33 = vector.load %arg4[%c4_36, %c0_37, %c0_38] : memref<5x23x128xbf16, #tpu.memory_space<vmem>>, vector<1x23x128xbf16>
    %34 = vector.shape_cast %33 : vector<1x23x128xbf16> to vector<23x128xbf16>
    %cst_39 = arith.constant dense<0.000000e+00> : vector<64x128xf32>
    %35 = tpu.matmul %32, %34, %cst_39 {dimension_numbers = #tpu.dot_dimension_numbers<[1], [0], [0], [1], [0, 0, 1, 1], [], []>} : vector<64x23xbf16>, vector<23x128xbf16>, vector<64x128xf32> -> vector<64x128xf32>
    %36 = arith.addf %31, %35 : vector<64x128xf32>
    %37 = vector.broadcast %8 : vector<1x128xf32> to vector<64x128xf32>
    %38 = arith.addf %36, %37 : vector<64x128xf32>
    %cst_40 = arith.constant 0.000000e+00 : f32
    %39 = vector.broadcast %cst_40 : f32 to vector<64x128xf32>
    %40 = arith.cmpf oge, %38, %39 : vector<64x128xf32>
    %cst_41 = arith.constant 0.00999999977 : f32
    %41 = vector.broadcast %cst_41 : f32 to vector<64x128xf32>
    %42 = arith.mulf %41, %38 : vector<64x128xf32>
    %43 = arith.select %40, %38, %42 : vector<64x128xi1>, vector<64x128xf32>
    %44 = vector.broadcast %9 : vector<1x128xf32> to vector<64x128xf32>
    %45 = arith.mulf %43, %44 : vector<64x128xf32>
    %46 = vector.broadcast %10 : vector<1x128xf32> to vector<64x128xf32>
    %47 = arith.addf %45, %46 : vector<64x128xf32>
    %c0_42 = arith.constant 0 : index
    %c0_43 = arith.constant 0 : index
    %c0_44 = arith.constant 0 : index
    %48 = vector.load %arg6[%c0_42, %c0_43, %c0_44] : memref<1x64x128xf32, #tpu.memory_space<vmem>>, vector<1x64x128xf32>
    %49 = vector.shape_cast %48 : vector<1x64x128xf32> to vector<64x128xf32>
    %50 = vector.shape_cast %47 : vector<64x128xf32> to vector<1x64x128xf32>
    tpu.vector_store %arg6[%c0_42, %c0_43, %c0_44], %50 {strides = array<i32>} : memref<1x64x128xf32, #tpu.memory_space<vmem>>, vector<1x64x128xf32>,
    return
  }
  func.func @transform_0(%arg0: i32, %arg1: i32) -> (i32, i32, i32) {
    %c0_i32 = arith.constant 0 : i32
    %c0_i32_0 = arith.constant 0 : i32
    return %arg0, %arg1, %c0_i32 : i32, i32, i32
  }
  func.func @transform_1(%arg0: i32, %arg1: i32) -> (i32, i32, i32) {
    %c1_i32 = arith.constant 1 : i32
    %0 = arith.addi %arg1, %c1_i32 : i32
    %c8_i32 = arith.constant 8 : i32
    %1 = arith.muli %0, %c8_i32 : i32
    %c0_i32 = arith.constant 0 : i32
    %c0_i32_0 = arith.constant 0 : i32
    return %arg0, %1, %c0_i32 : i32, i32, i32
  }
  func.func @transform_2(%arg0: i32, %arg1: i32) -> (i32, i32, i32) {
    %c0_i32 = arith.constant 0 : i32
    %c0_i32_0 = arith.constant 0 : i32
    %c0_i32_1 = arith.constant 0 : i32
    %c0_i32_2 = arith.constant 0 : i32
    return %c0_i32, %c0_i32_0, %c0_i32_1 : i32, i32, i32
  }
  func.func @transform_3(%arg0: i32, %arg1: i32) -> (i32, i32) {
    %c0_i32 = arith.constant 0 : i32
    %c0_i32_0 = arith.constant 0 : i32
    %c0_i32_1 = arith.constant 0 : i32
    return %c0_i32, %c0_i32_0 : i32, i32
  }
  func.func @transform_4(%arg0: i32, %arg1: i32) -> (i32, i32, i32) {
    %c0_i32 = arith.constant 0 : i32
    %c0_i32_0 = arith.constant 0 : i32
    return %arg0, %arg1, %c0_i32 : i32, i32, i32
  }
}

</mosaic_0001>

<llo_original>
// kernel: tpu_custom_call.1
$region0: #{tpu_custom_call.1}
  #allocation0 [shape = 'u32[]', space=smem, size = 0x4, offset = 0x4, fixed_abs, tag = 'smem constant byte address 0x4 - core index']
  #allocation1 [shape = 'u32[144,128]{1,0:T(1,128)}', space=vmem, size = 0x12000, scoped, tag = 'internal scratch']
  #allocation2 [shape = 'bf16[72,23]{1,0:T(8,128)(2,1)}', space=vmem, size = 0x4800, scoped, tag = 'scratch operand']
  %s0 = inlined_call_operand.vmem [shape: f32[2,72,23], index: 0, kind: input, shape index: {}]
  %s1 = inlined_call_operand.vmem [shape: f32[2,72,23], index: 1, kind: input, shape index: {}]
  %s2 = inlined_call_operand.vmem [shape: bf16[5,23,128], index: 2, kind: input, shape index: {}]
  %s3 = inlined_call_operand.vmem [shape: f32[3,128], index: 3, kind: input, shape index: {}]
  %s4 = inlined_call_operand.hbm [shape: f32[2,64,128], index: 4, kind: output, shape index: {}]
  %s5 = sld [smem:[#allocation0]]
  $region49: #{tpu_custom_call.1} parent=0
    _
  %s7 = ssub.s32 1, %s5
  %s8 = scalar_select 0, %s7, %s5
  $region1: #{tpu_custom_call.1} parent=0
    #allocation3 [shape = 'u8[65536]{0}', space=vmem, size = 0x10000, scoped, tag = 'output window, operand 0']
    #allocation4 [shape = 's32[2]{0}', space=sflag, size = 0x8, scoped, tag = 'scoped memory for tpu_custom_call.1']
    %9 = vsyncpa [#allocation4], 0
    %s10 = scalar_lea.sflag [#allocation4], 1
    %11 = vsyncpa %s10, 0
    loop: start=0, step=1, limit=4
    $region2: #{tpu_custom_call.1} parent=1 // loop_pre_header
      _
    $region3: #{tpu_custom_call.1} parent=1 // loop_header
      %s13 = sphi 0, %s17
      %p14 = scmp.ge.s32.totalorder %s13, 4
      %s20 = sphi 0, %s32
      %s21 = sphi 0, %s28
      %s22 = sphi 0, %s20
      %s23 = sphi 0, %s21
      %s24 = sphi 0, %s22
      %s25 = sphi 0, %s23
      %s37 = sphi 0, %s39
      %s40 = sphi 0, %s37
      %s41 = sphi 0, %s40
      %s57 = sphi 0, %s41
      %s69 = sphi 0, %s71
      %s72 = sphi 0, %s69
      %s73 = sphi 0, %s72
      %s89 = sphi 0, %s73
      %s93 = sphi 0, %s93
      %s95 = sphi 0, %s93
      %s96 = sphi 0, %s95
      %s110 = sphi 0, %s96
      %s114 = sphi 0, %s114
      %s116 = sphi 0, %s114
      %s117 = sphi 0, %s116
      %s131 = sphi 0, %s117
      %s139 = sphi 0, %s141
      %s142 = sphi 0, %s139
      %s143 = sphi 0, %s142
      %s159 = sphi 0, %s143
    $region4: #{tpu_custom_call.1} parent=1 // loop_header_branch
      %16 = sbr.rel (%p14) target = $region8
    $region5: #{tpu_custom_call.1} parent=1 // loop_body
      %s18 = ssub.s32 %s13, 1
      %s19 = ssub.s32 %s13, 2
      %s26 = sadd.s32 1, %s21
      %p27 = scmp.ge.s32.totalorder %s26, 1
      %s28 = scalar_select %p27, 0, %s26
      %s29 = sadd.s32 1, %s20
      %s30 = scalar_select %p27, %s29, %s20
      %p31 = scmp.ge.s32.totalorder %s30, 2
      %s32 = scalar_select %p31, 0, %s30
      %s33 = ssub.s32 %s20, %s32
      %s34 = ssub.s32 %s21, %s28
      %s35 = sor.u32 %s33, %s34
      %p36 = scmp.eq.s32.totalorder %s35, 0
      %s38 = sadd.s32 %s37, 1
      %s39 = scalar_select %p36, %s37, %s38
      %p42 = pneg %p36
      %p43 = scmp.eq.s32.totalorder %s13, 1
      %p44 = por %p42, %p43
      %p45 = scmp.ne.s32.totalorder %s37, %s40
      %p46 = scmp.eq.s32.totalorder %s13, 0
      %p47 = por %p45, %p46
      %p48 = scmp.ne.s32.totalorder %s37, %s40
      %p49 = scmp.eq.s32.totalorder %s18, 1
      %p50 = por %p48, %p49
      %p51 = scmp.ne.s32.totalorder %s40, %s41
      %p52 = scmp.eq.s32.totalorder %s18, 0
      %p53 = por %p51, %p52
      %p54 = scmp.ne.s32.totalorder %s40, %s41
      %p55 = scmp.eq.s32.totalorder %s19, 1
      %p56 = por %p54, %p55
      %p58 = scmp.ne.s32.totalorder %s41, %s57
      %p59 = scmp.eq.s32.totalorder %s19, 0
      %p60 = por %p58, %p59
      %s61 = sadd.s32 %s21, 1
      %s62 = smul.u32 %s61, 8
      %s63 = sadd.s32 %s28, 1
      %s64 = smul.u32 %s63, 8
      %s65 = ssub.s32 %s20, %s32
      %s66 = ssub.s32 %s62, %s64
      %s67 = sor.u32 %s65, %s66
      %p68 = scmp.eq.s32.totalorder %s67, 0
      %s70 = sadd.s32 %s69, 1
      %s71 = scalar_select %p68, %s69, %s70
      %p74 = pneg %p68
      %p75 = scmp.eq.s32.totalorder %s13, 1
      %p76 = por %p74, %p75
      %p77 = scmp.ne.s32.totalorder %s69, %s72
      %p78 = scmp.eq.s32.totalorder %s13, 0
      %p79 = por %p77, %p78
      %p80 = scmp.ne.s32.totalorder %s69, %s72
      %p81 = scmp.eq.s32.totalorder %s18, 1
      %p82 = por %p80, %p81
      %p83 = scmp.ne.s32.totalorder %s72, %s73
      %p84 = scmp.eq.s32.totalorder %s18, 0
      %p85 = por %p83, %p84
      %p86 = scmp.ne.s32.totalorder %s72, %s73
      %p87 = scmp.eq.s32.totalorder %s19, 1
      %p88 = por %p86, %p87
      %p90 = scmp.ne.s32.totalorder %s73, %s89
      %p91 = scmp.eq.s32.totalorder %s19, 0
      %p92 = por %p90, %p91
      %s94 = sadd.s32 %s93, 1
      %p97 = scmp.eq.s32.totalorder %s13, 1
      %p98 = scmp.ne.s32.totalorder %s93, %s95
      %p99 = scmp.eq.s32.totalorder %s13, 0
      %p100 = por %p98, %p99
      %p101 = scmp.ne.s32.totalorder %s93, %s95
      %p102 = scmp.eq.s32.totalorder %s18, 1
      %p103 = por %p101, %p102
      %p104 = scmp.ne.s32.totalorder %s95, %s96
      %p105 = scmp.eq.s32.totalorder %s18, 0
      %p106 = por %p104, %p105
      %p107 = scmp.ne.s32.totalorder %s95, %s96
      %p108 = scmp.eq.s32.totalorder %s19, 1
      %p109 = por %p107, %p108
      %p111 = scmp.ne.s32.totalorder %s96, %s110
      %p112 = scmp.eq.s32.totalorder %s19, 0
      %p113 = por %p111, %p112
      %s115 = sadd.s32 %s114, 1
      %p118 = scmp.eq.s32.totalorder %s13, 1
      %p119 = scmp.ne.s32.totalorder %s114, %s116
      %p120 = scmp.eq.s32.totalorder %s13, 0
      %p121 = por %p119, %p120
      %p122 = scmp.ne.s32.totalorder %s114, %s116
      %p123 = scmp.eq.s32.totalorder %s18, 1
      %p124 = por %p122, %p123
      %p125 = scmp.ne.s32.totalorder %s116, %s117
      %p126 = scmp.eq.s32.totalorder %s18, 0
      %p127 = por %p125, %p126
      %p128 = scmp.ne.s32.totalorder %s116, %s117
      %p129 = scmp.eq.s32.totalorder %s19, 1
      %p130 = por %p128, %p129
      %p132 = scmp.ne.s32.totalorder %s117, %s131
      %p133 = scmp.eq.s32.totalorder %s19, 0
      %p134 = por %p132, %p133
      %s135 = ssub.s32 %s20, %s32
      %s136 = ssub.s32 %s21, %s28
      %s137 = sor.u32 %s135, %s136
      %p138 = scmp.eq.s32.totalorder %s137, 0
      %s140 = sadd.s32 %s139, 1
      %s141 = scalar_select %p138, %s139, %s140
      %p144 = pneg %p138
      %p145 = scmp.eq.s32.totalorder %s13, 1
      %p146 = por %p144, %p145
      %p147 = scmp.ne.s32.totalorder %s139, %s142
      %p148 = scmp.eq.s32.totalorder %s13, 0
      %p149 = por %p147, %p148
      %p150 = scmp.ne.s32.totalorder %s139, %s142
      %p151 = scmp.eq.s32.totalorder %s18, 1
      %p152 = por %p150, %p151
      %p153 = scmp.ne.s32.totalorder %s142, %s143
      %p154 = scmp.eq.s32.totalorder %s18, 0
      %p155 = por %p153, %p154
      %p156 = scmp.ne.s32.totalorder %s142, %s143
      %p157 = scmp.eq.s32.totalorder %s19, 1
      %p158 = por %p156, %p157
      %p160 = scmp.ne.s32.totalorder %s143, %s159
      %p161 = scmp.eq.s32.totalorder %s19, 0
      %p162 = por %p160, %p161
      %p163 = scmp.le.s32.totalorder 1, %s13
      %p164 = scmp.lt.s32.totalorder %s13, 3
      %p165 = pnand %p163, %p164
      %p166 = pneg %p165
      // Predicated region
      $region9: #{tpu_custom_call.1} parent=5 // pred_check
        _
      $region10: #{tpu_custom_call.1} parent=5 // pred_check_branch
        %168 = sbr.rel (%p165) target = $region12
      $region11: #{tpu_custom_call.1} parent=5 // pred_region
        %s169 = ssub.s32 %s13, 1
        // Predicated region
        $region13: #{tpu_custom_call.1} parent=11 // pred_check
          %p170 = pneg %p106
        $region14: #{tpu_custom_call.1} parent=11 // pred_check_branch
          %172 = sbr.rel (%p170) target = $region16
        $region15: #{tpu_custom_call.1} parent=11 // pred_region
          _
        $region16: #{tpu_custom_call.1} parent=11 // pred_fallthru
          _
        // Predicated region
        $region17: #{tpu_custom_call.1} parent=11 // pred_check
          %p173 = pneg %p127
        $region18: #{tpu_custom_call.1} parent=11 // pred_check_branch
          %175 = sbr.rel (%p173) target = $region20
        $region19: #{tpu_custom_call.1} parent=11 // pred_region
          _
        $region20: #{tpu_custom_call.1} parent=11 // pred_fallthru
          _
      $region12: #{tpu_custom_call.1} parent=5 // pred_fallthru
        _
      %p176 = scmp.lt.s32.totalorder %s13, 2
      // Predicated region
      $region21: #{tpu_custom_call.1} parent=5 // pred_check
        %p177 = pneg %p176
      $region22: #{tpu_custom_call.1} parent=5 // pred_check_branch
        %179 = sbr.rel (%p177) target = $region24
      $region23: #{tpu_custom_call.1} parent=5 // pred_region
        // Predicated region
        $region25: #{tpu_custom_call.1} parent=23 // pred_check
          %p180 = pneg %p47
        $region26: #{tpu_custom_call.1} parent=23 // pred_check_branch
          %182 = sbr.rel (%p180) target = $region28
        $region27: #{tpu_custom_call.1} parent=23 // pred_region
          %s183 = smul.u32 8, %s21
          %s184 = ssub.s32 9, %s183
          %p185 = scmp.lt.s32.totalorder %s184, 8
          %s186 = scalar_select %p185, %s184, 8
          %s187 = smul.u32 128, %s186
          %p188 = scmp.lt.s32.totalorder %s20, 1
          %s189 = scalar_select %p188, %s20, 1
          %p190 = scmp.lt.s32.totalorder %s183, 8
          %s191 = scalar_select %p190, %s183, 8
          %s192 = smul.addr %s189, 9
          %s193 = sadd.s32 %s191, %s192
          %s194 = smul.addr %s193, 8
          %s195 = scalar_lea.vmem %s0, %s194
          %s196 = smul.u32 8, %s21
          %s197 = ssub.s32 9, %s196
          %p198 = scmp.lt.s32.totalorder %s197, 8
          %s199 = scalar_select %p198, %s197, 8
          %s200 = smul.u32 128, %s199
        $region28: #{tpu_custom_call.1} parent=23 // pred_fallthru
          _
        // Predicated region
        $region29: #{tpu_custom_call.1} parent=23 // pred_check
          %p201 = pneg %p79
        $region30: #{tpu_custom_call.1} parent=23 // pred_check_branch
          %203 = sbr.rel (%p201) target = $region32
        $region31: #{tpu_custom_call.1} parent=23 // pred_region
          %s204 = sadd.s32 %s21, 1
          %s205 = smul.u32 %s204, 8
          %p206 = scmp.lt.s32.totalorder %s20, 1
          %s207 = scalar_select %p206, %s20, 1
          %p208 = scmp.lt.s32.totalorder %s205, 8
          %s209 = scalar_select %p208, %s205, 8
          %s210 = smul.addr %s207, 9
          %s211 = sadd.s32 %s209, %s210
          %s212 = smul.addr %s211, 8
          %s213 = scalar_lea.vmem %s1, %s212
          %s214 = sadd.s32 %s21, 1
          %s215 = smul.u32 %s214, 8
        $region32: #{tpu_custom_call.1} parent=23 // pred_fallthru
          _
      $region24: #{tpu_custom_call.1} parent=5 // pred_fallthru
        _
      %p216 = scmp.le.s32.totalorder 1, %s13
      %p217 = scmp.lt.s32.totalorder %s13, 3
      %p218 = pnand %p216, %p217
      %p219 = pneg %p218
      // Predicated region
      $region33: #{tpu_custom_call.1} parent=5 // pred_check
        _
      $region34: #{tpu_custom_call.1} parent=5 // pred_check_branch
        %221 = sbr.rel (%p218) target = $region36
      $region35: #{tpu_custom_call.1} parent=5 // pred_region
        %s222 = ssub.s32 %s13, 1
        %s223 = smul.u32 8, %s23
        %s224 = ssub.s32 9, %s223
        %p225 = scmp.lt.s32.totalorder %s224, 8
        %s226 = scalar_select %p225, %s224, 8
        %s227 = smul.u32 128, %s226
        %p228 = scmp.lt.s32.totalorder %s22, 1
        %s229 = scalar_select %p228, %s22, 1
        %p230 = scmp.lt.s32.totalorder %s223, 8
        %s231 = scalar_select %p230, %s223, 8
        %s232 = smul.addr %s229, 9
        %s233 = sadd.s32 %s231, %s232
        %s234 = smul.addr %s233, 8
        %s235 = scalar_lea.vmem %s0, %s234
        %p236 = pneg %p53
        %p237 = pneg %p50
        %s238 = sadd.s32 %s23, 1
        %s239 = smul.u32 %s238, 8
        %p240 = scmp.lt.s32.totalorder %s22, 1
        %s241 = scalar_select %p240, %s22, 1
        %p242 = scmp.lt.s32.totalorder %s239, 8
        %s243 = scalar_select %p242, %s239, 8
        %s244 = smul.addr %s241, 9
        %s245 = sadd.s32 %s243, %s244
        %s246 = smul.addr %s245, 8
        %s247 = scalar_lea.vmem %s1, %s246
        %p248 = pneg %p85
        %p249 = pneg %p82
        %p250 = pneg %p106
        %p251 = pneg %p103
        %p252 = pneg %p127
        %p253 = pneg %p124
        %p254 = pneg %p155
        %p255 = pneg %p152
        %s256 = sand.u32 %s142, 1
        %s257 = scalar_lea.sflag [#allocation4], %s256
        %s258 = sand.u32 %s142, 1
        %s259 = smul.addr %s258, 64
        %s260 = scalar_lea.vmem [#allocation3], %s259
        %s261 = smul.u32 8, %s23
        %s262 = ssub.s32 9, %s261
        %p263 = scmp.lt.s32.totalorder %s262, 8
        %s264 = scalar_select %p263, %s262, 8
        %s265 = smul.u32 128, %s264
        %p266 = scmp.lt.s32.totalorder %s22, 1
        %s267 = scalar_select %p266, %s22, 1
        %p268 = scmp.lt.s32.totalorder %s261, 8
        %s269 = scalar_select %p268, %s261, 8
        %s270 = smul.addr %s267, 9
        %s271 = sadd.s32 %s269, %s270
        %s272 = smul.addr %s271, 8
        %s273 = scalar_lea.vmem %s0, %s272
        %s274 = smul.u32 8, %s23
        %s275 = ssub.s32 9, %s274
        %p276 = scmp.lt.s32.totalorder %s275, 8
        %s277 = scalar_select %p276, %s275, 8
        %s278 = smul.u32 128, %s277
        %s279 = sadd.s32 %s23, 1
        %s280 = smul.u32 %s279, 8
        %p281 = scmp.lt.s32.totalorder %s22, 1
        %s282 = scalar_select %p281, %s22, 1
        %p283 = scmp.lt.s32.totalorder %s280, 8
        %s284 = scalar_select %p283, %s280, 8
        %s285 = smul.addr %s282, 9
        %s286 = sadd.s32 %s284, %s285
        %s287 = smul.addr %s286, 8
        %s288 = scalar_lea.vmem %s1, %s287
        %s289 = sadd.s32 %s23, 1
        %s290 = smul.u32 %s289, 8
        %s291 = smul.u32 8, %s23
        %v293 = vld [vmem:[%s273] sm:$0xff]
        %v294 = vld [vmem:[%s273 + $0x8] sm:$0xff]
        %v295 = vld [vmem:[%s273 + $0x10] sm:$0xff]
        %v296 = vld [vmem:[%s273 + $0x18] sm:$0xff]
        %v297 = vld [vmem:[%s273 + $0x20] sm:$0xff]
        %v298 = vld [vmem:[%s273 + $0x28] sm:$0xff]
        %v299 = vld [vmem:[%s273 + $0x30] sm:$0xff]
        %v300 = vld [vmem:[%s273 + $0x38] sm:$0xff]
        %v301 = vpack.c.bf16 %v294, %v293
        %v302 = vpack.c.bf16 %v296, %v295
        %v303 = vpack.c.bf16 %v298, %v297
        %v304 = vpack.c.bf16 %v300, %v299
        %v309 = vunpack.c.l.b16 %v301
        %v310 = vunpack.c.h.b16 %v301
        %v311 = vunpack.c.l.b16 %v302
        %v312 = vunpack.c.h.b16 %v302
        %v313 = vunpack.c.l.b16 %v303
        %v314 = vunpack.c.h.b16 %v303
        %v315 = vunpack.c.l.b16 %v304
        %v316 = vunpack.c.h.b16 %v304
        %v317 = vpack.c.b16 %v309, %v309
        %v318 = vpack.c.b16 %v310, %v310
        %v319 = vpack.c.b16 %v311, %v311
        %v320 = vpack.c.b16 %v312, %v312
        %v321 = vpack.c.b16 %v313, %v313
        %v322 = vpack.c.b16 %v314, %v314
        %v323 = vpack.c.b16 %v315, %v315
        %v324 = vpack.c.b16 %v316, %v316
        %vm333 = vcmask 183296
        %334 = vst.msk [vmem:[#allocation2] sm:$0xf] %vm333, %v317
        %335 = vst.msk [vmem:[#allocation2 + $0x4] sm:$0xf] %vm333, %v318
        %336 = vst.msk [vmem:[#allocation2 + $0x8] sm:$0xf] %vm333, %v319
        %337 = vst.msk [vmem:[#allocation2 + $0xc] sm:$0xf] %vm333, %v320
        %338 = vst.msk [vmem:[#allocation2 + $0x10] sm:$0xf] %vm333, %v321
        %339 = vst.msk [vmem:[#allocation2 + $0x14] sm:$0xf] %vm333, %v322
        %340 = vst.msk [vmem:[#allocation2 + $0x18] sm:$0xf] %vm333, %v323
        %341 = vst.msk [vmem:[#allocation2 + $0x1c] sm:$0xf] %vm333, %v324
        %v342 = vld [vmem:[%s288] sm:$0xff]
        %v343 = vpack.c.bf16 %v342, %v342
        %344 = vst.msk [vmem:[#allocation2 + $0x20] sm:$0xf] %vm333, %v343
        %v345 = vld [vmem:[%s3] sm:$0x1]
        %v346 = vld [vmem:[%s3 + $0x1] sm:$0x1]
        %v347 = vld [vmem:[%s3 + $0x2] sm:$0x1]
        %v348 = vld [vmem:[#allocation2] sm:$0xf]
        %v349 = vld [vmem:[#allocation2 + $0x4] sm:$0xf]
        %v350 = vld [vmem:[#allocation2 + $0x8] sm:$0xf]
        %v351 = vld [vmem:[#allocation2 + $0xc] sm:$0xf]
        %v352 = vld [vmem:[#allocation2 + $0x10] sm:$0xf]
        %v353 = vld [vmem:[#allocation2 + $0x14] sm:$0xf]
        %v354 = vld [vmem:[#allocation2 + $0x18] sm:$0xf]
        %v355 = vld [vmem:[#allocation2 + $0x1c] sm:$0xf]
        %v356 = vld [vmem:[%s2] sm:$0xf]
        %v357 = vld [vmem:[%s2 + $0x4] sm:$0xf]
        %v358 = vld [vmem:[%s2 + $0x8] sm:$0xf]
        %v359 = vld [vmem:[#allocation2 + $0x20] sm:$0x1]
        %s360 = scalar_lea.vmem %s2, 12
        %v361 = vld [vmem:[%s360] sm:$0xf]
        %v362 = vld [vmem:[%s360 + $0x4] sm:$0xf]
        %v363 = vld [vmem:[%s360 + $0x8] sm:$0xf]
        %v373 = vunpack.c.l.b16 %v348
        %v374 = vunpack.c.l.b16 %v349
        %v375 = vunpack.c.l.b16 %v350
        %v376 = vunpack.c.l.b16 %v351
        %v377 = vunpack.c.l.b16 %v352
        %v378 = vunpack.c.l.b16 %v353
        %v379 = vunpack.c.l.b16 %v354
        %v380 = vunpack.c.l.b16 %v355
        %v381 = vunpack.c.l.b16 %v359
        %v382 = vpack.c.b16 %v374, %v373
        %v383 = vpack.c.b16 %v376, %v375
        %v384 = vpack.c.b16 %v378, %v377
        %v385 = vpack.c.b16 %v380, %v379
        %v386 = vpack.c.b16 %v381, %v381
        %vm387 = vsmask.f32 7424
        %v389 = vshrl.u32 %v382, 16
        %v391 = vshll.u32 %v382, 16
        %v393 = vrot.slane %v391, 1
        %v394 = vor.u32 %v389, %v393
        %v396 = vshll.u32 %v383, 16
        %v398 = vrot.slane %v396, 1
        %v399 = vsel %vm387, %v394, %v398
        %v400 = vshrl.u32 %v383, 16
        %v402 = vor.u32 %v400, %v398
        %v404 = vshll.u32 %v384, 16
        %v406 = vrot.slane %v404, 1
        %v407 = vsel %vm387, %v402, %v406
        %v408 = vshrl.u32 %v384, 16
        %v410 = vor.u32 %v408, %v406
        %v412 = vshll.u32 %v385, 16
        %v414 = vrot.slane %v412, 1
        %v415 = vsel %vm387, %v410, %v414
        %v416 = vshrl.u32 %v385, 16
        %v418 = vor.u32 %v416, %v414
        %v420 = vshll.u32 %v386, 16
        %v422 = vrot.slane %v420, 1
        %v423 = vsel %vm387, %v418, %v422
        %v427 = vunpack.c.l.b16 %v361
        %v428 = vunpack.c.l.b16 %v362
        %v429 = vunpack.c.l.b16 %v363
        %v430 = vpack.c.b16 %v428, %v427
        %v431 = vpack.c.b16 %v429, %v429
        %vm433 = vcmask 187392
        %v435 = vsel %vm433, %v399, 0
        %v438 = vsel %vm433, %v407, 0
        %v441 = vsel %vm433, %v415, 0
        %v444 = vsel %vm433, %v423, 0
        %vm446 = vcmask 1042432
        %vm447 = vcmask 1043456
        %v448 = vsel %vm446, 4294967295, 65535
        %v449 = vsel %vm447, %v448, 0
        %v451 = vand.u32 %v431, %v449
        %453 = vmatprep.subr.bf16.mxu0 0
        %454 = vmatpush1.bf16.msra.mxu0 %v430
        %455 = vmatprep.subr.bf16.mxu0 0
        %456 = vmatpush1.bf16.msra.mxu0 %v451
        %457 = vmatprep.subr.bf16.mxu0 0
        %458 = vmatpush1.bf16.msra.mxu0 0
        %459 = vmatprep.subr.bf16.mxu0 0
        %460 = vmatpush1.bf16.msra.mxu0 0
        %461 = vmatprep.subr.bf16.mxu0 0
        %462 = vmatpush1.bf16.msra.mxu0 0
        %463 = vmatprep.subr.bf16.mxu0 0
        %464 = vmatpush1.bf16.msra.mxu0 0
        %465 = vmatprep.subr.bf16.mxu0 0
        %466 = vmatpush1.bf16.msra.mxu0 0
        %467 = vmatprep.subr.bf16.mxu0 0
        %468 = vmatpush1.bf16.msra.mxu0 0
        %469 = vmatprep.subr.bf16.mxu0 0
        %470 = vmatpush1.bf16.msra.mxu0 0
        %471 = vmatprep.subr.bf16.mxu0 0
        %472 = vmatpush1.bf16.msra.mxu0 0
        %473 = vmatprep.subr.bf16.mxu0 0
        %474 = vmatpush1.bf16.msra.mxu0 0
        %475 = vmatprep.subr.bf16.mxu0 0
        %476 = vmatpush1.bf16.msra.mxu0 0
        %477 = vmatprep.subr.bf16.mxu0 0
        %478 = vmatpush1.bf16.msra.mxu0 0
        %479 = vmatprep.subr.bf16.mxu0 0
        %480 = vmatpush1.bf16.msra.mxu0 0
        %481 = vmatprep.subr.bf16.mxu0 0
        %482 = vmatpush1.bf16.msra.mxu0 0
        %483 = vmatprep.subr.bf16.mxu0 0
        %484 = vmatpush1.bf16.msra.mxu0 0
        %485 = vmatprep.mubr.bf16.mxu0 0
        %486 = vmatmul.mubr.bf16.gmra.mrb[0].mxu0 %v435
        %v487 = vpop.f32.mrb[0].mxu0
        %v488 = vadd.f32 0.0, %v487
        %v489 = vpop.f32.mrb[0].mxu0
        %v490 = vpop.f32.mrb[0].mxu0
        %v491 = vadd.f32 0.0, %v490
        %v492 = vpop.f32.mrb[0].mxu0
        %493 = vmatprep.mubr.bf16.mxu0 0
        %494 = vmatmul.mubr.bf16.gmra.mrb[0].mxu0 %v438
        %v495 = vpop.f32.mrb[0].mxu0
        %v496 = vadd.f32 0.0, %v495
        %v497 = vpop.f32.mrb[0].mxu0
        %v498 = vpop.f32.mrb[0].mxu0
        %v499 = vadd.f32 0.0, %v498
        %v500 = vpop.f32.mrb[0].mxu0
        %501 = vmatprep.mubr.bf16.mxu0 0
        %502 = vmatmul.mubr.bf16.gmra.mrb[0].mxu0 %v441
        %v503 = vpop.f32.mrb[0].mxu0
        %v504 = vadd.f32 0.0, %v503
        %v505 = vpop.f32.mrb[0].mxu0
        %v506 = vpop.f32.mrb[0].mxu0
        %v507 = vadd.f32 0.0, %v506
        %v508 = vpop.f32.mrb[0].mxu0
        %509 = vmatprep.mubr.bf16.mxu0 0
        %510 = vmatmul.mubr.bf16.gmra.mrb[0].mxu0 %v444
        %v511 = vpop.f32.mrb[0].mxu0
        %v512 = vadd.f32 0.0, %v511
        %v513 = vpop.f32.mrb[0].mxu0
        %v514 = vpop.f32.mrb[0].mxu0
        %v515 = vadd.f32 0.0, %v514
        %v516 = vpop.f32.mrb[0].mxu0
        %517 = vdwg.mxu0
        %v521 = vunpack.c.l.b16 %v356
        %v522 = vunpack.c.l.b16 %v357
        %v523 = vunpack.c.l.b16 %v358
        %v524 = vpack.c.b16 %v522, %v521
        %v525 = vpack.c.b16 %v523, %v523
        %v527 = vsel %vm433, %v382, 0
        %v529 = vsel %vm433, %v383, 0
        %v531 = vsel %vm433, %v384, 0
        %v533 = vsel %vm433, %v385, 0
        %v536 = vand.u32 %v525, %v449
        %538 = vmatprep.subr.bf16.mxu0 0
        %539 = vmatpush1.bf16.msra.mxu0 %v524
        %540 = vmatprep.subr.bf16.mxu0 0
        %541 = vmatpush1.bf16.msra.mxu0 %v536
        %542 = vmatprep.subr.bf16.mxu0 0
        %543 = vmatpush1.bf16.msra.mxu0 0
        %544 = vmatprep.subr.bf16.mxu0 0
        %545 = vmatpush1.bf16.msra.mxu0 0
        %546 = vmatprep.subr.bf16.mxu0 0
        %547 = vmatpush1.bf16.msra.mxu0 0
        %548 = vmatprep.subr.bf16.mxu0 0
        %549 = vmatpush1.bf16.msra.mxu0 0
        %550 = vmatprep.subr.bf16.mxu0 0
        %551 = vmatpush1.bf16.msra.mxu0 0
        %552 = vmatprep.subr.bf16.mxu0 0
        %553 = vmatpush1.bf16.msra.mxu0 0
        %554 = vmatprep.subr.bf16.mxu0 0
        %555 = vmatpush1.bf16.msra.mxu0 0
        %556 = vmatprep.subr.bf16.mxu0 0
        %557 = vmatpush1.bf16.msra.mxu0 0
        %558 = vmatprep.subr.bf16.mxu0 0
        %559 = vmatpush1.bf16.msra.mxu0 0
        %560 = vmatprep.subr.bf16.mxu0 0
        %561 = vmatpush1.bf16.msra.mxu0 0
        %562 = vmatprep.subr.bf16.mxu0 0
        %563 = vmatpush1.bf16.msra.mxu0 0
        %564 = vmatprep.subr.bf16.mxu0 0
        %565 = vmatpush1.bf16.msra.mxu0 0
        %566 = vmatprep.subr.bf16.mxu0 0
        %567 = vmatpush1.bf16.msra.mxu0 0
        %568 = vmatprep.subr.bf16.mxu0 0
        %569 = vmatpush1.bf16.msra.mxu0 0
        %570 = vmatprep.mubr.bf16.mxu0 0
        %571 = vmatmul.mubr.bf16.gmra.mrb[0].mxu0 %v527
        %v572 = vpop.f32.mrb[0].mxu0
        %v573 = vadd.f32 %v488, %v572
        %v574 = vpop.f32.mrb[0].mxu0
        %v575 = vpop.f32.mrb[0].mxu0
        %v576 = vadd.f32 %v491, %v575
        %v577 = vpop.f32.mrb[0].mxu0
        %578 = vmatprep.mubr.bf16.mxu0 0
        %579 = vmatmul.mubr.bf16.gmra.mrb[0].mxu0 %v529
        %v580 = vpop.f32.mrb[0].mxu0
        %v581 = vadd.f32 %v496, %v580
        %v582 = vpop.f32.mrb[0].mxu0
        %v583 = vpop.f32.mrb[0].mxu0
        %v584 = vadd.f32 %v499, %v583
        %v585 = vpop.f32.mrb[0].mxu0
        %586 = vmatprep.mubr.bf16.mxu0 0
        %587 = vmatmul.mubr.bf16.gmra.mrb[0].mxu0 %v531
        %v588 = vpop.f32.mrb[0].mxu0
        %v589 = vadd.f32 %v504, %v588
        %v590 = vpop.f32.mrb[0].mxu0
        %v591 = vpop.f32.mrb[0].mxu0
        %v592 = vadd.f32 %v507, %v591
        %v593 = vpop.f32.mrb[0].mxu0
        %594 = vmatprep.mubr.bf16.mxu0 0
        %595 = vmatmul.mubr.bf16.gmra.mrb[0].mxu0 %v533
        %v596 = vpop.f32.mrb[0].mxu0
        %v597 = vadd.f32 %v512, %v596
        %v598 = vpop.f32.mrb[0].mxu0
        %v599 = vpop.f32.mrb[0].mxu0
        %v600 = vadd.f32 %v515, %v599
        %v601 = vpop.f32.mrb[0].mxu0
        %602 = vdwg.mxu0
        %v603 = vld [vmem:[#allocation2] sm:$0xe]
        %s604 = scalar_lea.vmem %s2, 24
        %v605 = vld [vmem:[%s604] sm:$0xf]
        %v606 = vld [vmem:[%s604 + $0x4] sm:$0xf]
        %v607 = vld [vmem:[%s604 + $0x8] sm:$0xf]
        %v609 = vunpack.c.l.b16 %v603
        %v610 = vpack.c.b16 %v374, %v609
        %vm611 = vcmask 1046528
        %v612 = vrot.slane %v610, 1
        %v613 = vrot.slane %v383, 1
        %v614 = vsel %vm611, %v612, %v613
        %v615 = vrot.slane %v384, 1
        %v616 = vsel %vm611, %v613, %v615
        %v617 = vrot.slane %v385, 1
        %v618 = vsel %vm611, %v615, %v617
        %v619 = vrot.slane %v386, 1
        %v620 = vsel %vm611, %v617, %v619
        %v624 = vunpack.c.l.b16 %v605
        %v625 = vunpack.c.l.b16 %v606
        %v626 = vunpack.c.l.b16 %v607
        %v627 = vpack.c.b16 %v625, %v624
        %v628 = vpack.c.b16 %v626, %v626
        %v631 = vsel %vm433, %v614, 0
        %v634 = vsel %vm433, %v616, 0
        %v637 = vsel %vm433, %v618, 0
        %v640 = vsel %vm433, %v620, 0
        %v643 = vand.u32 %v628, %v449
        %645 = vmatprep.subr.bf16.mxu0 0
        %646 = vmatpush1.bf16.msra.mxu0 %v627
        %647 = vmatprep.subr.bf16.mxu0 0
        %648 = vmatpush1.bf16.msra.mxu0 %v643
        %649 = vmatprep.subr.bf16.mxu0 0
        %650 = vmatpush1.bf16.msra.mxu0 0
        %651 = vmatprep.subr.bf16.mxu0 0
        %652 = vmatpush1.bf16.msra.mxu0 0
        %653 = vmatprep.subr.bf16.mxu0 0
        %654 = vmatpush1.bf16.msra.mxu0 0
        %655 = vmatprep.subr.bf16.mxu0 0
        %656 = vmatpush1.bf16.msra.mxu0 0
        %657 = vmatprep.subr.bf16.mxu0 0
        %658 = vmatpush1.bf16.msra.mxu0 0
        %659 = vmatprep.subr.bf16.mxu0 0
        %660 = vmatpush1.bf16.msra.mxu0 0
        %661 = vmatprep.subr.bf16.mxu0 0
        %662 = vmatpush1.bf16.msra.mxu0 0
        %663 = vmatprep.subr.bf16.mxu0 0
        %664 = vmatpush1.bf16.msra.mxu0 0
        %665 = vmatprep.subr.bf16.mxu0 0
        %666 = vmatpush1.bf16.msra.mxu0 0
        %667 = vmatprep.subr.bf16.mxu0 0
        %668 = vmatpush1.bf16.msra.mxu0 0
        %669 = vmatprep.subr.bf16.mxu0 0
        %670 = vmatpush1.bf16.msra.mxu0 0
        %671 = vmatprep.subr.bf16.mxu0 0
        %672 = vmatpush1.bf16.msra.mxu0 0
        %673 = vmatprep.subr.bf16.mxu0 0
        %674 = vmatpush1.bf16.msra.mxu0 0
        %675 = vmatprep.subr.bf16.mxu0 0
        %676 = vmatpush1.bf16.msra.mxu0 0
        %677 = vmatprep.mubr.bf16.mxu0 0
        %678 = vmatmul.mubr.bf16.gmra.mrb[0].mxu0 %v631
        %v679 = vpop.f32.mrb[0].mxu0
        %v680 = vadd.f32 0.0, %v679
        %v681 = vpop.f32.mrb[0].mxu0
        %v682 = vpop.f32.mrb[0].mxu0
        %v683 = vadd.f32 0.0, %v682
        %v684 = vpop.f32.mrb[0].mxu0
        %685 = vmatprep.mubr.bf16.mxu0 0
        %686 = vmatmul.mubr.bf16.gmra.mrb[0].mxu0 %v634
        %v687 = vpop.f32.mrb[0].mxu0
        %v688 = vadd.f32 0.0, %v687
        %v689 = vpop.f32.mrb[0].mxu0
        %v690 = vpop.f32.mrb[0].mxu0
        %v691 = vadd.f32 0.0, %v690
        %v692 = vpop.f32.mrb[0].mxu0
        %693 = vmatprep.mubr.bf16.mxu0 0
        %694 = vmatmul.mubr.bf16.gmra.mrb[0].mxu0 %v637
        %v695 = vpop.f32.mrb[0].mxu0
        %v696 = vadd.f32 0.0, %v695
        %v697 = vpop.f32.mrb[0].mxu0
        %v698 = vpop.f32.mrb[0].mxu0
        %v699 = vadd.f32 0.0, %v698
        %v700 = vpop.f32.mrb[0].mxu0
        %701 = vmatprep.mubr.bf16.mxu0 0
        %702 = vmatmul.mubr.bf16.gmra.mrb[0].mxu0 %v640
        %v703 = vpop.f32.mrb[0].mxu0
        %v704 = vadd.f32 0.0, %v703
        %v705 = vpop.f32.mrb[0].mxu0
        %v706 = vpop.f32.mrb[0].mxu0
        %v707 = vadd.f32 0.0, %v706
        %v708 = vpop.f32.mrb[0].mxu0
        %709 = vdwg.mxu0
        %v710 = vadd.f32 %v573, %v680
        %v711 = vadd.f32 %v576, %v683
        %v712 = vadd.f32 %v581, %v688
        %v713 = vadd.f32 %v584, %v691
        %v714 = vadd.f32 %v589, %v696
        %v715 = vadd.f32 %v592, %v699
        %v716 = vadd.f32 %v597, %v704
        %v717 = vadd.f32 %v600, %v707
        %v718 = vld [vmem:[#allocation2 + $0x20] sm:$0x3]
        %s719 = scalar_lea.vmem %s2, 36
        %v720 = vld [vmem:[%s719] sm:$0xf]
        %v721 = vld [vmem:[%s719 + $0x4] sm:$0xf]
        %v722 = vld [vmem:[%s719 + $0x8] sm:$0xf]
        %v724 = vunpack.c.l.b16 %v718
        %v725 = vpack.c.b16 %v724, %v724
        %vm726 = vsmask.f32 6400
        %v728 = vshrl.u32 %v610, 16
        %v730 = vrot.slane %v728, 1
        %v731 = vshll.u32 %v610, 16
        %v733 = vrot.slane %v731, 2
        %v734 = vor.u32 %v730, %v733
        %v735 = vrot.slane %v400, 1
        %v736 = vrot.slane %v396, 2
        %v737 = vor.u32 %v735, %v736
        %v738 = vsel %vm726, %v734, %v737
        %v739 = vrot.slane %v408, 1
        %v740 = vrot.slane %v404, 2
        %v741 = vor.u32 %v739, %v740
        %v742 = vsel %vm726, %v737, %v741
        %v743 = vrot.slane %v416, 1
        %v744 = vrot.slane %v412, 2
        %v745 = vor.u32 %v743, %v744
        %v746 = vsel %vm726, %v741, %v745
        %v748 = vshrl.u32 %v725, 16
        %v750 = vrot.slane %v748, 1
        %v751 = vshll.u32 %v725, 16
        %v753 = vrot.slane %v751, 2
        %v754 = vor.u32 %v750, %v753
        %v755 = vsel %vm726, %v745, %v754
        %v759 = vunpack.c.l.b16 %v720
        %v760 = vunpack.c.l.b16 %v721
        %v761 = vunpack.c.l.b16 %v722
        %v762 = vpack.c.b16 %v760, %v759
        %v763 = vpack.c.b16 %v761, %v761
        %v766 = vsel %vm433, %v738, 0
        %v769 = vsel %vm433, %v742, 0
        %v772 = vsel %vm433, %v746, 0
        %v775 = vsel %vm433, %v755, 0
        %v778 = vand.u32 %v763, %v449
        %780 = vmatprep.subr.bf16.mxu0 0
        %781 = vmatpush1.bf16.msra.mxu0 %v762
        %782 = vmatprep.subr.bf16.mxu0 0
        %783 = vmatpush1.bf16.msra.mxu0 %v778
        %784 = vmatprep.subr.bf16.mxu0 0
        %785 = vmatpush1.bf16.msra.mxu0 0
        %786 = vmatprep.subr.bf16.mxu0 0
        %787 = vmatpush1.bf16.msra.mxu0 0
        %788 = vmatprep.subr.bf16.mxu0 0
        %789 = vmatpush1.bf16.msra.mxu0 0
        %790 = vmatprep.subr.bf16.mxu0 0
        %791 = vmatpush1.bf16.msra.mxu0 0
        %792 = vmatprep.subr.bf16.mxu0 0
        %793 = vmatpush1.bf16.msra.mxu0 0
        %794 = vmatprep.subr.bf16.mxu0 0
        %795 = vmatpush1.bf16.msra.mxu0 0
        %796 = vmatprep.subr.bf16.mxu0 0
        %797 = vmatpush1.bf16.msra.mxu0 0
        %798 = vmatprep.subr.bf16.mxu0 0
        %799 = vmatpush1.bf16.msra.mxu0 0
        %800 = vmatprep.subr.bf16.mxu0 0
        %801 = vmatpush1.bf16.msra.mxu0 0
        %802 = vmatprep.subr.bf16.mxu0 0
        %803 = vmatpush1.bf16.msra.mxu0 0
        %804 = vmatprep.subr.bf16.mxu0 0
        %805 = vmatpush1.bf16.msra.mxu0 0
        %806 = vmatprep.subr.bf16.mxu0 0
        %807 = vmatpush1.bf16.msra.mxu0 0
        %808 = vmatprep.subr.bf16.mxu0 0
        %809 = vmatpush1.bf16.msra.mxu0 0
        %810 = vmatprep.subr.bf16.mxu0 0
        %811 = vmatpush1.bf16.msra.mxu0 0
        %812 = vmatprep.mubr.bf16.mxu0 0
        %813 = vmatmul.mubr.bf16.gmra.mrb[0].mxu0 %v766
        %v814 = vpop.f32.mrb[0].mxu0
        %v815 = vadd.f32 0.0, %v814
        %v816 = vpop.f32.mrb[0].mxu0
        %v817 = vpop.f32.mrb[0].mxu0
        %v818 = vadd.f32 0.0, %v817
        %v819 = vpop.f32.mrb[0].mxu0
        %820 = vmatprep.mubr.bf16.mxu0 0
        %821 = vmatmul.mubr.bf16.gmra.mrb[0].mxu0 %v769
        %v822 = vpop.f32.mrb[0].mxu0
        %v823 = vadd.f32 0.0, %v822
        %v824 = vpop.f32.mrb[0].mxu0
        %v825 = vpop.f32.mrb[0].mxu0
        %v826 = vadd.f32 0.0, %v825
        %v827 = vpop.f32.mrb[0].mxu0
        %828 = vmatprep.mubr.bf16.mxu0 0
        %829 = vmatmul.mubr.bf16.gmra.mrb[0].mxu0 %v772
        %v830 = vpop.f32.mrb[0].mxu0
        %v831 = vadd.f32 0.0, %v830
        %v832 = vpop.f32.mrb[0].mxu0
        %v833 = vpop.f32.mrb[0].mxu0
        %v834 = vadd.f32 0.0, %v833
        %v835 = vpop.f32.mrb[0].mxu0
        %836 = vmatprep.mubr.bf16.mxu0 0
        %837 = vmatmul.mubr.bf16.gmra.mrb[0].mxu0 %v775
        %v838 = vpop.f32.mrb[0].mxu0
        %v839 = vadd.f32 0.0, %v838
        %v840 = vpop.f32.mrb[0].mxu0
        %v841 = vpop.f32.mrb[0].mxu0
        %v842 = vadd.f32 0.0, %v841
        %v843 = vpop.f32.mrb[0].mxu0
        %844 = vdwg.mxu0
        %v845 = vadd.f32 %v710, %v815
        %v846 = vadd.f32 %v711, %v818
        %v847 = vadd.f32 %v712, %v823
        %v848 = vadd.f32 %v713, %v826
        %v849 = vadd.f32 %v714, %v831
        %v850 = vadd.f32 %v715, %v834
        %v851 = vadd.f32 %v716, %v839
        %v852 = vadd.f32 %v717, %v842
        %v853 = vld [vmem:[#allocation2] sm:$0xc]
        %s854 = scalar_lea.vmem %s2, 48
        %v855 = vld [vmem:[%s854] sm:$0xf]
        %v856 = vld [vmem:[%s854 + $0x4] sm:$0xf]
        %v857 = vld [vmem:[%s854 + $0x8] sm:$0xf]
        %v859 = vunpack.c.l.b16 %v853
        %v860 = vpack.c.b16 %v374, %v859
        %vm861 = vcmask 1045504
        %v862 = vrot.slane %v860, 2
        %v863 = vrot.slane %v383, 2
        %v864 = vsel %vm861, %v862, %v863
        %v865 = vrot.slane %v384, 2
        %v866 = vsel %vm861, %v863, %v865
        %v867 = vrot.slane %v385, 2
        %v868 = vsel %vm861, %v865, %v867
        %v869 = vrot.slane %v725, 2
        %v870 = vsel %vm861, %v867, %v869
        %v874 = vunpack.c.l.b16 %v855
        %v875 = vunpack.c.l.b16 %v856
        %v876 = vunpack.c.l.b16 %v857
        %v877 = vpack.c.b16 %v875, %v874
        %v878 = vpack.c.b16 %v876, %v876
        %v881 = vsel %vm433, %v864, 0
        %v884 = vsel %vm433, %v866, 0
        %v887 = vsel %vm433, %v868, 0
        %v890 = vsel %vm433, %v870, 0
        %v893 = vand.u32 %v878, %v449
        %895 = vmatprep.subr.bf16.mxu0 0
        %896 = vmatpush1.bf16.msra.mxu0 %v877
        %897 = vmatprep.subr.bf16.mxu0 0
        %898 = vmatpush1.bf16.msra.mxu0 %v893
        %899 = vmatprep.subr.bf16.mxu0 0
        %900 = vmatpush1.bf16.msra.mxu0 0
        %901 = vmatprep.subr.bf16.mxu0 0
        %902 = vmatpush1.bf16.msra.mxu0 0
        %903 = vmatprep.subr.bf16.mxu0 0
        %904 = vmatpush1.bf16.msra.mxu0 0
        %905 = vmatprep.subr.bf16.mxu0 0
        %906 = vmatpush1.bf16.msra.mxu0 0
        %907 = vmatprep.subr.bf16.mxu0 0
        %908 = vmatpush1.bf16.msra.mxu0 0
        %909 = vmatprep.subr.bf16.mxu0 0
        %910 = vmatpush1.bf16.msra.mxu0 0
        %911 = vmatprep.subr.bf16.mxu0 0
        %912 = vmatpush1.bf16.msra.mxu0 0
        %913 = vmatprep.subr.bf16.mxu0 0
        %914 = vmatpush1.bf16.msra.mxu0 0
        %915 = vmatprep.subr.bf16.mxu0 0
        %916 = vmatpush1.bf16.msra.mxu0 0
        %917 = vmatprep.subr.bf16.mxu0 0
        %918 = vmatpush1.bf16.msra.mxu0 0
        %919 = vmatprep.subr.bf16.mxu0 0
        %920 = vmatpush1.bf16.msra.mxu0 0
        %921 = vmatprep.subr.bf16.mxu0 0
        %922 = vmatpush1.bf16.msra.mxu0 0
        %923 = vmatprep.subr.bf16.mxu0 0
        %924 = vmatpush1.bf16.msra.mxu0 0
        %925 = vmatprep.subr.bf16.mxu0 0
        %926 = vmatpush1.bf16.msra.mxu0 0
        %927 = vmatprep.mubr.bf16.mxu0 0
        %928 = vmatmul.mubr.bf16.gmra.mrb[0].mxu0 %v881
        %v929 = vpop.f32.mrb[0].mxu0
        %v930 = vadd.f32 0.0, %v929
        %v931 = vpop.f32.mrb[0].mxu0
        %v932 = vpop.f32.mrb[0].mxu0
        %v933 = vadd.f32 0.0, %v932
        %v934 = vpop.f32.mrb[0].mxu0
        %935 = vmatprep.mubr.bf16.mxu0 0
        %936 = vmatmul.mubr.bf16.gmra.mrb[0].mxu0 %v884
        %v937 = vpop.f32.mrb[0].mxu0
        %v938 = vadd.f32 0.0, %v937
        %v939 = vpop.f32.mrb[0].mxu0
        %v940 = vpop.f32.mrb[0].mxu0
        %v941 = vadd.f32 0.0, %v940
        %v942 = vpop.f32.mrb[0].mxu0
        %943 = vmatprep.mubr.bf16.mxu0 0
        %944 = vmatmul.mubr.bf16.gmra.mrb[0].mxu0 %v887
        %v945 = vpop.f32.mrb[0].mxu0
        %v946 = vadd.f32 0.0, %v945
        %v947 = vpop.f32.mrb[0].mxu0
        %v948 = vpop.f32.mrb[0].mxu0
        %v949 = vadd.f32 0.0, %v948
        %v950 = vpop.f32.mrb[0].mxu0
        %951 = vmatprep.mubr.bf16.mxu0 0
        %952 = vmatmul.mubr.bf16.gmra.mrb[0].mxu0 %v890
        %v953 = vpop.f32.mrb[0].mxu0
        %v954 = vadd.f32 0.0, %v953
        %v955 = vpop.f32.mrb[0].mxu0
        %v956 = vpop.f32.mrb[0].mxu0
        %v957 = vadd.f32 0.0, %v956
        %v958 = vpop.f32.mrb[0].mxu0
        %959 = vdwg.mxu0
        %v960 = vadd.f32 %v845, %v930
        %v961 = vadd.f32 %v846, %v933
        %v962 = vadd.f32 %v847, %v938
        %v963 = vadd.f32 %v848, %v941
        %v964 = vadd.f32 %v849, %v946
        %v965 = vadd.f32 %v850, %v949
        %v966 = vadd.f32 %v851, %v954
        %v967 = vadd.f32 %v852, %v957
        %v968 = vlaneseq
        %v969 = vshrl.u32 %v968, 7
        %v970 = vsub.s32 0, %v969
        %v971 = vrot.slane %v345, %v970
        %v972 = vadd.f32 %v960, %v971
        %v973 = vadd.f32 %v961, %v971
        %v974 = vadd.f32 %v962, %v971
        %v975 = vadd.f32 %v963, %v971
        %v976 = vadd.f32 %v964, %v971
        %v977 = vadd.f32 %v965, %v971
        %v978 = vadd.f32 %v966, %v971
        %v979 = vadd.f32 %v967, %v971
        %vm980 = vcmp.ge.f32.partialorder %v972, 0.0
        %vm981 = vcmp.ge.f32.partialorder %v973, 0.0
        %vm982 = vcmp.ge.f32.partialorder %v974, 0.0
        %vm983 = vcmp.ge.f32.partialorder %v975, 0.0
        %vm984 = vcmp.ge.f32.partialorder %v976, 0.0
        %vm985 = vcmp.ge.f32.partialorder %v977, 0.0
        %vm986 = vcmp.ge.f32.partialorder %v978, 0.0
        %vm987 = vcmp.ge.f32.partialorder %v979, 0.0
        %v988 = vmul.f32 %v972, 0.01
        %v989 = vmul.f32 %v973, 0.01
        %v990 = vmul.f32 %v974, 0.01
        %v991 = vmul.f32 %v975, 0.01
        %v992 = vmul.f32 %v976, 0.01
        %v993 = vmul.f32 %v977, 0.01
        %v994 = vmul.f32 %v978, 0.01
        %v995 = vmul.f32 %v979, 0.01
        %v996 = vsel %vm980, %v972, %v988
        %v997 = vsel %vm981, %v973, %v989
        %v998 = vsel %vm982, %v974, %v990
        %v999 = vsel %vm983, %v975, %v991
        %v1000 = vsel %vm984, %v976, %v992
        %v1001 = vsel %vm985, %v977, %v993
        %v1002 = vsel %vm986, %v978, %v994
        %v1003 = vsel %vm987, %v979, %v995
        %v1004 = vlaneseq
        %v1005 = vshrl.u32 %v1004, 7
        %v1006 = vsub.s32 0, %v1005
        %v1007 = vrot.slane %v346, %v1006
        %v1008 = vmul.f32 %v996, %v1007
        %v1009 = vmul.f32 %v997, %v1007
        %v1010 = vmul.f32 %v998, %v1007
        %v1011 = vmul.f32 %v999, %v1007
        %v1012 = vmul.f32 %v1000, %v1007
        %v1013 = vmul.f32 %v1001, %v1007
        %v1014 = vmul.f32 %v1002, %v1007
        %v1015 = vmul.f32 %v1003, %v1007
        %v1016 = vlaneseq
        %v1017 = vshrl.u32 %v1016, 7
        %v1018 = vsub.s32 0, %v1017
        %v1019 = vrot.slane %v347, %v1018
        %v1020 = vadd.f32 %v1008, %v1019
        %v1021 = vadd.f32 %v1009, %v1019
        %v1022 = vadd.f32 %v1010, %v1019
        %v1023 = vadd.f32 %v1011, %v1019
        %v1024 = vadd.f32 %v1012, %v1019
        %v1025 = vadd.f32 %v1013, %v1019
        %v1026 = vadd.f32 %v1014, %v1019
        %v1027 = vadd.f32 %v1015, %v1019
        %1028 = vst [vmem:[%s260] sm:$0xff] %v1020
        %1029 = vst [vmem:[%s260 + $0x8] sm:$0xff] %v1021
        %1030 = vst [vmem:[%s260 + $0x10] sm:$0xff] %v1022
        %1031 = vst [vmem:[%s260 + $0x18] sm:$0xff] %v1023
        %1032 = vst [vmem:[%s260 + $0x20] sm:$0xff] %v1024
        %1033 = vst [vmem:[%s260 + $0x28] sm:$0xff] %v1025
        %1034 = vst [vmem:[%s260 + $0x30] sm:$0xff] %v1026
        %1035 = vst [vmem:[%s260 + $0x38] sm:$0xff] %v1027
        %s1036 = sand.u32 %s142, 1
        %s1037 = scalar_lea.sflag [#allocation4], %s1036
        %s1038 = sand.u32 %s142, 1
        %s1039 = smul.addr %s1038, 64
        %s1040 = scalar_lea.vmem [#allocation3], %s1039
        // Predicated region
        $region37: #{tpu_custom_call.1} parent=35 // pred_check
          %p1041 = pneg %p152
        $region38: #{tpu_custom_call.1} parent=35 // pred_check_branch
          %1043 = sbr.rel (%p1041) target = $region40
        $region39: #{tpu_custom_call.1} parent=35 // pred_region
          %s1044 = smul.u32 8, %s23
          %s1046 = ssub.s32 1024, 1024
          %1047 = vsyncadd %s1037, %s1046
          %s1048 = smul.addr %s22, 8
          %s1049 = sadd.s32 %s1044, %s1048
          %s1050 = smul.addr %s1049, 128
          %s1051 = scalar_lea.hbm %s4, %s1050
          %s1052 = sshll.u32 %s1040, 4
          %s1053 = int_to_ptr.vmem [resolvable:$true] %s1052
          %1058 = dma.vmem_to_hbm [thread:$0]  %s1053, 1024, %s1051, %s1037, 128, 128, 8
        $region40: #{tpu_custom_call.1} parent=35 // pred_fallthru
          _
      $region36: #{tpu_custom_call.1} parent=5 // pred_fallthru
        _
      %p1059 = scmp.le.s32.totalorder 2, %s13
      // Predicated region
      $region41: #{tpu_custom_call.1} parent=5 // pred_check
        %p1060 = pneg %p1059
      $region42: #{tpu_custom_call.1} parent=5 // pred_check_branch
        %1062 = sbr.rel (%p1060) target = $region44
      $region43: #{tpu_custom_call.1} parent=5 // pred_region
        %s1063 = ssub.s32 %s13, 2
        // Predicated region
        $region45: #{tpu_custom_call.1} parent=43 // pred_check
          %p1064 = pneg %p158
        $region46: #{tpu_custom_call.1} parent=43 // pred_check_branch
          %1066 = sbr.rel (%p1064) target = $region48
        $region47: #{tpu_custom_call.1} parent=43 // pred_region
          %s1067 = sand.u32 %s143, 1
          %s1068 = scalar_lea.sflag [#allocation4], %s1067
          %s1069 = sand.u32 %s143, 1
          %s1070 = smul.addr %s1069, 64
          %s1071 = scalar_lea.vmem [#allocation3], %s1070
          %1072 = dma.done %s1068, 1024
        $region48: #{tpu_custom_call.1} parent=43 // pred_fallthru
          _
      $region44: #{tpu_custom_call.1} parent=5 // pred_fallthru
        _
    $region6: #{tpu_custom_call.1} parent=1 // loop_footer
      %s17 = sadd.s32 1, %s13
    $region7: #{tpu_custom_call.1} parent=1 // loop_footer_branch
      %12 = sbr.rel target = $region3
    $region8: #{tpu_custom_call.1} parent=1 // loop_exit
      _
    %1073 = vsyncpa [#allocation4], 1
    %s1074 = scalar_lea.sflag [#allocation4], 1
    %1075 = vsyncpa %s1074, 1

</llo_original>
